<compile_context>
chip_gen: v6e
topology: v6e:2x2x1
jax: 0.10.0
libtpu: 0.0.40
codegen_flags: <defaults>
</compile_context>

<pallas_src>
import functools

import jax
import jax.numpy as jnp
from jax.experimental import pallas as pl
from jax.experimental.pallas import tpu as pltpu

BN_EPS = 1e-5
LANE = 128


def _round_up(d, m):
    return ((d + m - 1) // m) * m


def _pick_tile(dim):
    """Largest lane-dense tile (512/256/128) dividing dim, else the full dim."""
    for t in (512, 256, 128):
        if dim % t == 0:
            return t
    return dim


def _vmem_capacity_bytes():
    try:
        info = pltpu.get_tpu_info()
        cap = getattr(info, "vmem_capacity_bytes", None)
        if cap:
            return int(cap)
    except Exception:
        pass
    return 64 << 20  # conservative: v7x per-TensorCore VMEM


def _bn_relu_f32(acc, gamma, beta, relu):
    """Train-mode BatchNorm1d (biased variance, two-pass, clamped) + optional ReLU.

    acc: (N, tn) f32 pre-activations (full batch resident). gamma/beta: (1, tn) f32.
    """
    inv_n = 1.0 / acc.shape[0]
    mean = jnp.sum(acc, axis=0, keepdims=True) * inv_n
    centered = acc - mean
    var = jnp.sum(centered * centered, axis=0, keepdims=True) * inv_n
    var = jnp.maximum(var, 0.0)                       # guard rounding -> no NaN
    inv_std = jax.lax.rsqrt(var + BN_EPS)             # EUP slot (free vs VPU)
    y = centered * (gamma * inv_std) + beta
    if relu:
        y = jnp.maximum(y, 0.0)
    return y


# ---------------------------------------------------------------------------
# Path 1: grid-less fully-fused chain (small / mid configs, fits VMEM budget).
# ---------------------------------------------------------------------------
def _fused_mlp_kernel(*refs, relu_flags, mxu_dtype):
    """refs = (x, w1, gamma1, beta1, ..., wL, gammaL, betaL, out)."""
    x_ref, o_ref = refs[0], refs[-1]
    layer_refs = refs[1:-1]

    h = x_ref[...]                                   # stays f32 between layers
    for i, relu in enumerate(relu_flags):
        w_ref = layer_refs[3 * i + 0]                # (in_pad, out_pad) bf16
        g_ref = layer_refs[3 * i + 1]                # (1, out_pad) f32
        b_ref = layer_refs[3 * i + 2]                # (1, out_pad) f32
        # bf16 MXU operands, f32 accumulation.
        acc = jnp.dot(h.astype(mxu_dtype), w_ref[...].astype(mxu_dtype),
                      preferred_element_type=jnp.float32)
        h = _bn_relu_f32(acc, g_ref[...].astype(jnp.float32),
                         b_ref[...].astype(jnp.float32), relu)
    o_ref[...] = h.astype(o_ref.dtype)


# ---------------------------------------------------------------------------
# Path 2: tiled per-layer kernel (production sizes, streamed weights).
# ---------------------------------------------------------------------------
def _tiled_layer_kernel(x_ref, w_ref, g_ref, b_ref, o_ref, acc_ref, *,
                        relu, mxu_dtype):
    k = pl.program_id(1)

    @pl.when(k == 0)
    def _():
        acc_ref[...] = jnp.zeros_like(acc_ref)

    acc_ref[...] += jnp.dot(x_ref[...].astype(mxu_dtype),
                            w_ref[...].astype(mxu_dtype),
                            preferred_element_type=jnp.float32)

    @pl.when(k == pl.num_programs(1) - 1)
    def _():
        y = _bn_relu_f32(acc_ref[...], g_ref[...].astype(jnp.float32),
                         b_ref[...].astype(jnp.float32), relu)
        o_ref[...] = y.astype(o_ref.dtype)


def _tiled_layer(x, w, gamma, beta, *, relu, mxu_dtype, out_dtype, vmem_limit):
    n, k_dim = x.shape
    k_w, out_pad = w.shape
    assert k_dim == k_w, (k_dim, k_w)
    tk = _pick_tile(k_dim)
    tn = _pick_tile(out_pad)
    grid = (out_pad // tn, k_dim // tk)              # K (reduction) axis last

    kernel = functools.partial(_tiled_layer_kernel, relu=relu, mxu_dtype=mxu_dtype)
    return pl.pallas_call(
        kernel,
        out_shape=jax.ShapeDtypeStruct((n, out_pad), out_dtype),
        grid_spec=pltpu.PrefetchScalarGridSpec(
            num_scalar_prefetch=0,
            grid=grid,
            in_specs=[
                pl.BlockSpec((n, tk), lambda j, k: (0, k)),    # full batch resident
                pl.BlockSpec((tk, tn), lambda j, k: (k, j)),   # streamed weight tile
                pl.BlockSpec((1, tn), lambda j, k: (0, j)),
                pl.BlockSpec((1, tn), lambda j, k: (0, j)),
            ],
            out_specs=pl.BlockSpec((n, tn), lambda j, k: (0, j)),
            scratch_shapes=[pltpu.VMEM((n, tn), jnp.float32)],
        ),
        compiler_params=pltpu.CompilerParams(
            # Column tiles are independent (per-column BN stats) -> "parallel"
            # lets v7x's two TCs split them; K is the sequential reduction.
            dimension_semantics=("parallel", "arbitrary"),
            vmem_limit_bytes=vmem_limit,
        ),
    )(x, w, gamma, beta)


# ---------------------------------------------------------------------------
# Dispatcher + parameters.
# ---------------------------------------------------------------------------
def fused_mlp(x, layers, relu_flags, *, mxu_dtype=jnp.bfloat16,
              trim_output=True, force_tiled=False):
    """x: (N, in_dim). layers: dicts with lane-padded 'w_t'/'gamma'/'beta' and 'out_dim'."""
    n = x.shape[0]
    out_pad = layers[-1]["w_t"].shape[1]
    out_true = layers[-1]["out_dim"]
    out_dtype = x.dtype

    # Generation-aware VMEM budget (64 MiB on v7x, 128 MiB on v5e/v6e),
    # leaving headroom for compiler scratch; vmem_limit derives from it.
    cap = _vmem_capacity_bytes()
    budget = max(min(cap - (16 << 20), 96 << 20), 32 << 20)

    args = [x]
    for p in layers:
        args.extend([p["w_t"], p["gamma"], p["beta"]])

    # Footprint estimate for the grid-less path, INCLUDING the live f32
    # temporaries of the BN epilogue (acc, centered, y, ...).
    max_w = max([x.shape[1]] + [p["w_t"].shape[1] for p in layers])
    est = sum(a.size * a.dtype.itemsize for a in args)
    est += n * out_pad * jnp.dtype(out_dtype).itemsize
    est += 5 * n * max_w * 4

    if not force_tiled and est <= budget:
        kernel = functools.partial(_fused_mlp_kernel,
                                   relu_flags=tuple(relu_flags),
                                   mxu_dtype=mxu_dtype)
        out = pl.pallas_call(
            kernel,
            out_shape=jax.ShapeDtypeStruct((n, out_pad), out_dtype),
            in_specs=[pl.BlockSpec(memory_space=pltpu.MemorySpace.VMEM)] * len(args),
            out_specs=pl.BlockSpec(memory_space=pltpu.MemorySpace.VMEM),
            compiler_params=pltpu.CompilerParams(vmem_limit_bytes=budget),
        )(*args)
    else:
        # Tiled fallback: one pipelined pallas_call per layer; intermediates
        # travel HBM in bf16 (same rounding point as the fused path's cast).
        h = x
        for i, (p, relu) in enumerate(zip(layers, relu_flags)):
            is_last = i == len(layers) - 1
            h = _tiled_layer(h, p["w_t"], p["gamma"], p["beta"],
                             relu=relu, mxu_dtype=mxu_dtype,
                             out_dtype=(out_dtype if is_last else mxu_dtype),
                             vmem_limit=budget)
        out = h

    if trim_output and out_true != out_pad:
        # NOTE: this slice is an extra XLA copy and hands consumers a masked
        # (non-lane-dense) layout; pass trim_output=False to keep the padded,
        # lane-dense width end-to-end when the consumer can handle it.
        out = out[:, :out_true]
    return out


def init_linear_bn_params(key, in_dim, out_dim, *, in_pad=None, out_pad=None,
                          param_dtype=jnp.bfloat16):
    """Linear (no bias: exact only because BN follows and cancels it) + BN params,
    zero-padded to lane-dense dims. Weights stored bf16 for MXU/HBM efficiency."""
    in_pad = in_dim if in_pad is None else in_pad
    out_pad = _round_up(out_dim, LANE) if out_pad is None else out_pad
    bound = 1.0 / (in_dim ** 0.5)
    w = jax.random.uniform(key, (out_dim, in_dim), jnp.float32, -bound, bound)
    w_t = jnp.zeros((in_pad, out_pad), jnp.float32).at[:in_dim, :out_dim].set(w.T)
    gamma = jnp.zeros((1, out_pad), jnp.float32).at[:, :out_dim].set(1.0)
    beta = jnp.zeros((1, out_pad), jnp.float32)
    return {"w_t": w_t.astype(param_dtype), "gamma": gamma, "beta": beta,
            "out_dim": out_dim}


def make_projection_mlp_params(key, in_dim, hidden_dim=64, out_dim=64,
                               param_dtype=jnp.bfloat16):
    k1, k2, k3, k4 = jax.random.split(key, 4)
    hidden_pad = _round_up(hidden_dim, LANE)
    out_pad = _round_up(out_dim, LANE)
    return {
        "layer1": init_linear_bn_params(k1, in_dim, hidden_dim,
                                        in_pad=in_dim, out_pad=hidden_pad,
                                        param_dtype=param_dtype),
        "layer2": init_linear_bn_params(k2, hidden_dim, hidden_dim,
                                        in_pad=hidden_pad, out_pad=hidden_pad,
                                        param_dtype=param_dtype),
        # NOTE: as in the original module, layer3's BN is BatchNorm1d(hidden_dim);
        # shapes only line up when hidden_dim == out_dim (true for the defaults).
        "layer3": init_linear_bn_params(k3, hidden_dim, out_dim,
                                        in_pad=hidden_pad, out_pad=out_pad,
                                        param_dtype=param_dtype),
        "layer4": init_linear_bn_params(k4, in_dim, out_dim,
                                        in_pad=in_dim, out_pad=out_pad,
                                        param_dtype=param_dtype),
    }


def _chain(num_layers):
    if num_layers == 3:
        return [("layer1", True), ("layer2", True), ("layer3", False)]
    elif num_layers == 2:
        return [("layer1", True), ("layer3", False)]
    elif num_layers == 1:
        return [("layer4", False)]
    raise Exception


def projection_mlp_forward(params, x, num_layers=1, *, mxu_dtype=jnp.bfloat16,
                           trim_output=True, force_tiled=False):
    """Matches projection_MLP.forward (train-mode BN) for num_layers in {1, 2, 3}."""
    chain = _chain(num_layers)
    return fused_mlp(x, [params[name] for name, _ in chain],
                     [relu for _, relu in chain],
                     mxu_dtype=mxu_dtype, trim_output=trim_output,
                     force_tiled=force_tiled)


def _reference_forward(params, x, num_layers=1, mxu_dtype=jnp.bfloat16):
    """Pure-JAX reference mirroring the kernel's dtype policy (bf16 matmul operands,
    f32 accumulation, f32 two-pass BN). Pass mxu_dtype=f32 for an un-rounded check."""
    chain = _chain(num_layers)

    def lin_bn(p, h, relu):
        acc = jnp.dot(h.astype(mxu_dtype), p["w_t"].astype(mxu_dtype),
                      preferred_element_type=jnp.float32)
        mean = jnp.mean(acc, axis=0, keepdims=True)
        var = jnp.mean((acc - mean) ** 2, axis=0, keepdims=True)
        y = ((acc - mean) / jnp.sqrt(var + BN_EPS)
             * p["gamma"].astype(jnp.float32) + p["beta"].astype(jnp.float32))
        return jnp.maximum(y, 0.0) if relu else y

    h = x.astype(jnp.float32)
    for name, relu in chain:
        h = lin_bn(params[name], h, relu)
    return h[:, :params[chain[-1][0]]["out_dim"]]


if __name__ == "__main__":
    # Small shapes consistent with the module defaults: batch=8, in_dim=32,
    # hidden=out=64 (internally padded to 128 lanes).
    batch, in_dim, hidden_dim, out_dim = 8, 32, 64, 64

    key = jax.random.PRNGKey(0)
    kx, kp = jax.random.split(key)
    x = jax.random.normal(kx, (batch, in_dim), jnp.float32)
    params = make_projection_mlp_params(kp, in_dim, hidden_dim, out_dim)

    # Grid-less fused fast path: all three chain configurations.
    for nl in (1, 2, 3):
        out = jax.block_until_ready(projection_mlp_forward(params, x, num_layers=nl))
        ref = _reference_forward(params, x, num_layers=nl)
        assert out.shape == (batch, out_dim)
        assert jnp.allclose(out, ref, atol=2e-3, rtol=2e-3), f"fused mismatch (nl={nl})"

    # Tiled (streamed-weight, pl.when-finalized BN) path on the same small shapes.
    out_t = jax.block_until_ready(
        projection_mlp_forward(params, x, num_layers=3, force_tiled=True))
    ref3 = _reference_forward(params, x, num_layers=3)
    assert jnp.allclose(out_t, ref3, atol=2e-3, rtol=2e-3), "tiled mismatch (nl=3)"

    # Semantic sanity vs an un-rounded f32 reference (bf16 weight rounding only).
    out3 = projection_mlp_forward(params, x, num_layers=3).astype(jnp.float32)
    ref3_f32 = _reference_forward(params, x, num_layers=3, mxu_dtype=jnp.float32)
    assert float(jnp.max(jnp.abs(out3 - ref3_f32))) < 0.1, "bf16 path deviates too much"

    # Mid-size check exercising a real (out-tile x K-tile) grid with K accumulation
    # and "parallel" column tiles (hidden == out, as the original module requires).
    b2, d2, h2 = 16, 64, 1024
    k2x, k2p = jax.random.split(jax.random.PRNGKey(1))
    x2 = jax.random.normal(k2x, (b2, d2), jnp.float32)
    params2 = make_projection_mlp_params(k2p, d2, h2, h2)
    out2 = jax.block_until_ready(
        projection_mlp_forward(params2, x2, num_layers=3, force_tiled=True))
    ref2 = _reference_forward(params2, x2, num_layers=3)
    assert out2.shape == (b2, h2)
    assert jnp.allclose(out2, ref2, atol=2e-3, rtol=2e-3), "tiled mid-size mismatch"

    # TODO(synk): BatchNorm running-stats update / eval mode is not implemented
    # (forward here is train-mode batch statistics, matching module training).
    print("KERNEL_OK")
</pallas_src>

<mosaic_0001>
module attributes {stable_mosaic.version = 11 : i64} {
  func.func @_fused_mlp_kernel(%arg0: memref<8x32xf32, #tpu.memory_space<vmem>>, %arg1: memref<32x128xbf16, #tpu.memory_space<vmem>>, %arg2: memref<1x128xf32, #tpu.memory_space<vmem>>, %arg3: memref<1x128xf32, #tpu.memory_space<vmem>>, %arg4: memref<8x128xf32, #tpu.memory_space<vmem>>) attributes {dimension_semantics = [], scalar_prefetch = 0 : i64, scratch_operands = 0 : i64, tpu.core_type = #tpu.core_type<tc>} {
    %c0 = arith.constant 0 : index
    %c0_0 = arith.constant 0 : index
    %0 = vector.load %arg0[%c0, %c0_0] : memref<8x32xf32, #tpu.memory_space<vmem>>, vector<8x32xf32>
    %1 = arith.truncf %0 : vector<8x32xf32> to vector<8x32xbf16>
    %c0_1 = arith.constant 0 : index
    %c0_2 = arith.constant 0 : index
    %2 = vector.load %arg1[%c0_1, %c0_2] : memref<32x128xbf16, #tpu.memory_space<vmem>>, vector<32x128xbf16>
    %cst = arith.constant dense<0.000000e+00> : vector<8x128xf32>
    %3 = tpu.matmul %1, %2, %cst {dimension_numbers = #tpu.dot_dimension_numbers<[1], [0], [0], [1], [0, 0, 1, 1], [], []>} : vector<8x32xbf16>, vector<32x128xbf16>, vector<8x128xf32> -> vector<8x128xf32>
    %c0_3 = arith.constant 0 : index
    %c0_4 = arith.constant 0 : index
    %4 = vector.load %arg2[%c0_3, %c0_4] : memref<1x128xf32, #tpu.memory_space<vmem>>, vector<1x128xf32>
    %c0_5 = arith.constant 0 : index
    %c0_6 = arith.constant 0 : index
    %5 = vector.load %arg3[%c0_5, %c0_6] : memref<1x128xf32, #tpu.memory_space<vmem>>, vector<1x128xf32>
    %cst_7 = arith.constant dense<0.000000e+00> : vector<128xf32>
    %6 = vector.multi_reduction <add>, %3, %cst_7 [0] : vector<8x128xf32> to vector<128xf32>
    %7 = vector.shape_cast %6 : vector<128xf32> to vector<1x128xf32>
    %cst_8 = arith.constant 1.250000e-01 : f32
    %8 = vector.broadcast %cst_8 : f32 to vector<1x128xf32>
    %9 = arith.mulf %7, %8 : vector<1x128xf32>
    %10 = vector.broadcast %9 : vector<1x128xf32> to vector<8x128xf32>
    %11 = arith.subf %3, %10 : vector<8x128xf32>
    %12 = arith.mulf %11, %11 : vector<8x128xf32>
    %cst_9 = arith.constant dense<0.000000e+00> : vector<128xf32>
    %13 = vector.multi_reduction <add>, %12, %cst_9 [0] : vector<8x128xf32> to vector<128xf32>
    %14 = vector.shape_cast %13 : vector<128xf32> to vector<1x128xf32>
    %cst_10 = arith.constant 1.250000e-01 : f32
    %15 = vector.broadcast %cst_10 : f32 to vector<1x128xf32>
    %16 = arith.mulf %14, %15 : vector<1x128xf32>
    %cst_11 = arith.constant 0.000000e+00 : f32
    %17 = vector.broadcast %cst_11 : f32 to vector<1x128xf32>
    %18 = arith.maximumf %16, %17 : vector<1x128xf32>
    %cst_12 = arith.constant 9.99999974E-6 : f32
    %19 = vector.broadcast %cst_12 : f32 to vector<1x128xf32>
    %20 = arith.addf %18, %19 : vector<1x128xf32>
    %21 = math.rsqrt %20 : vector<1x128xf32>
    %22 = arith.mulf %4, %21 : vector<1x128xf32>
    %23 = vector.broadcast %22 : vector<1x128xf32> to vector<8x128xf32>
    %24 = arith.mulf %11, %23 : vector<8x128xf32>
    %25 = vector.broadcast %5 : vector<1x128xf32> to vector<8x128xf32>
    %26 = arith.addf %24, %25 : vector<8x128xf32>
    %c0_13 = arith.constant 0 : index
    %c0_14 = arith.constant 0 : index
    %27 = vector.load %arg4[%c0_13, %c0_14] : memref<8x128xf32, #tpu.memory_space<vmem>>, vector<8x128xf32>
    tpu.vector_store %arg4[%c0_13, %c0_14], %26 {strides = array<i32>} : memref<8x128xf32, #tpu.memory_space<vmem>>, vector<8x128xf32>,
    return
  }
}

</mosaic_0001>

<llo_original>
// kernel: tpu_custom_call.1
$region0: #{tpu_custom_call.1}
  #allocation0 [shape = 'u32[]', space=smem, size = 0x4, offset = 0x4, fixed_abs, tag = 'smem constant byte address 0x4 - core index']
  #allocation1 [shape = 'u32[144,128]{1,0:T(1,128)}', space=vmem, size = 0x12000, scoped, tag = 'internal scratch']
  %s0 = inlined_call_operand.hbm [shape: f32[8,32], index: 0, kind: input, shape index: {}]
  %s1 = inlined_call_operand.hbm [shape: bf16[32,128], index: 1, kind: input, shape index: {}]
  %s2 = inlined_call_operand.vmem [shape: f32[1,128], index: 2, kind: input, shape index: {}]
  %s3 = inlined_call_operand.vmem [shape: f32[1,128], index: 3, kind: input, shape index: {}]
  %s4 = inlined_call_operand.hbm [shape: f32[8,128], index: 4, kind: output, shape index: {}]
  %s5 = sld [smem:[#allocation0]]
  $region34: #{tpu_custom_call.1} parent=0
    _
  %s7 = ssub.s32 1, %s5
  %s8 = scalar_select 0, %s7, %s5
  $region1: #{tpu_custom_call.1} parent=0
    #allocation2 [shape = 'u8[4096]{0}', space=vmem, size = 0x1000, scoped, tag = 'input window, operand 0, single buffered']
    #allocation3 [shape = 's32[1]{0}', space=sflag, size = 0x4, scoped, tag = 'scoped memory for tpu_custom_call.1']
    #allocation4 [shape = 's32[1]{0}', space=sflag, size = 0x4, scoped, tag = 'scoped memory for tpu_custom_call.1']
    #allocation5 [shape = 'u8[8192]{0}', space=vmem, size = 0x2000, scoped, tag = 'input window, operand 1, single buffered']
    #allocation6 [shape = 's32[1]{0}', space=sflag, size = 0x4, scoped, tag = 'scoped memory for tpu_custom_call.1']
    #allocation7 [shape = 'u8[4096]{0}', space=vmem, size = 0x1000, scoped, tag = 'output window, operand 0, single buffered']
    %9 = vsyncpa [#allocation3], 0
    %10 = vsyncpa [#allocation6], 0
    %11 = vsyncpa [#allocation4], 0
    // Predicated region
    $region2: #{tpu_custom_call.1} parent=1 // pred_check
      _
    $region3: #{tpu_custom_call.1} parent=1 // pred_check_branch
      %13 = sbr.rel (0) target = $region5
    $region4: #{tpu_custom_call.1} parent=1 // pred_region
      %s15 = ssub.s32 128, 128
      %16 = vsyncadd [#allocation3], %s15
      %s18 = sshll.u32 [#allocation2], 4
      %s19 = int_to_ptr.vmem [resolvable:$true] %s18
      %21 = dma.hbm_to_vmem [thread:$0]  %s0, 128, %s19, [#allocation3]
    $region5: #{tpu_custom_call.1} parent=1 // pred_fallthru
      _
    // Predicated region
    $region6: #{tpu_custom_call.1} parent=1 // pred_check
      _
    $region7: #{tpu_custom_call.1} parent=1 // pred_check_branch
      %23 = sbr.rel (0) target = $region9
    $region8: #{tpu_custom_call.1} parent=1 // pred_region
      %s25 = ssub.s32 256, 256
      %26 = vsyncadd [#allocation6], %s25
      %s27 = sshll.u32 [#allocation5], 4
      %s28 = int_to_ptr.vmem [resolvable:$true] %s27
      %33 = dma.hbm_to_vmem [thread:$0]  %s1, 256, %s28, [#allocation6], 64, 64, 4
    $region9: #{tpu_custom_call.1} parent=1 // pred_fallthru
      _
    // Predicated region
    $region10: #{tpu_custom_call.1} parent=1 // pred_check
      _
    $region11: #{tpu_custom_call.1} parent=1 // pred_check_branch
      %35 = sbr.rel (0) target = $region13
    $region12: #{tpu_custom_call.1} parent=1 // pred_region
      _
    $region13: #{tpu_custom_call.1} parent=1 // pred_fallthru
      _
    // Predicated region
    $region14: #{tpu_custom_call.1} parent=1 // pred_check
      _
    $region15: #{tpu_custom_call.1} parent=1 // pred_check_branch
      %37 = sbr.rel (0) target = $region17
    $region16: #{tpu_custom_call.1} parent=1 // pred_region
      _
    $region17: #{tpu_custom_call.1} parent=1 // pred_fallthru
      _
    // Predicated region
    $region18: #{tpu_custom_call.1} parent=1 // pred_check
      _
    $region19: #{tpu_custom_call.1} parent=1 // pred_check_branch
      %39 = sbr.rel (0) target = $region21
    $region20: #{tpu_custom_call.1} parent=1 // pred_region
      %40 = dma.done [#allocation3], 128
    $region21: #{tpu_custom_call.1} parent=1 // pred_fallthru
      _
    // Predicated region
    $region22: #{tpu_custom_call.1} parent=1 // pred_check
      _
    $region23: #{tpu_custom_call.1} parent=1 // pred_check_branch
      %42 = sbr.rel (0) target = $region25
    $region24: #{tpu_custom_call.1} parent=1 // pred_region
      %43 = dma.done [#allocation6], 256
    $region25: #{tpu_custom_call.1} parent=1 // pred_fallthru
      _
    %v45 = vld [vmem:[#allocation2] sm:$0xff]
    %v46 = vpack.c.bf16 %v45, %v45
    %v47 = vld [vmem:[#allocation5] sm:$0xf]
    %v48 = vld [vmem:[#allocation5 + $0x4] sm:$0xf]
    %v49 = vld [vmem:[#allocation5 + $0x8] sm:$0xf]
    %v50 = vld [vmem:[#allocation5 + $0xc] sm:$0xf]
    %v55 = vunpack.c.l.b16 %v47
    %v56 = vunpack.c.l.b16 %v48
    %v57 = vunpack.c.l.b16 %v49
    %v58 = vunpack.c.l.b16 %v50
    %v59 = vpack.c.b16 %v56, %v55
    %v60 = vpack.c.b16 %v58, %v57
    %vm63 = vcmask 261120
    %v65 = vsel %vm63, %v46, 0
    %67 = vmatprep.subr.bf16.mxu0 0
    %68 = vmatpush1.bf16.msra.mxu0 0
    %69 = vmatprep.subr.bf16.mxu0 0
    %70 = vmatpush1.bf16.msra.mxu0 0
    %71 = vmatprep.subr.bf16.mxu0 0
    %72 = vmatpush1.bf16.msra.mxu0 0
    %73 = vmatprep.subr.bf16.mxu0 0
    %74 = vmatpush1.bf16.msra.mxu0 0
    %75 = vmatprep.subr.bf16.mxu0 0
    %76 = vmatpush1.bf16.msra.mxu0 0
    %77 = vmatprep.subr.bf16.mxu0 0
    %78 = vmatpush1.bf16.msra.mxu0 0
    %79 = vmatprep.subr.bf16.mxu0 0
    %80 = vmatpush1.bf16.msra.mxu0 %v60
    %81 = vmatprep.subr.bf16.mxu0 0
    %82 = vmatpush1.bf16.msra.mxu0 %v59
    %83 = vmatprep.subr.bf16.mxu0 0
    %84 = vmatpush2.bf16.msra.mxu0 0
    %85 = vmatprep.subr.bf16.mxu0 0
    %86 = vmatpush2.bf16.msra.mxu0 0
    %87 = vmatprep.subr.bf16.mxu0 0
    %88 = vmatpush2.bf16.msra.mxu0 0
    %89 = vmatprep.subr.bf16.mxu0 0
    %90 = vmatpush2.bf16.msra.mxu0 0
    %91 = vmatprep.subr.bf16.mxu0 0
    %92 = vmatpush2.bf16.msra.mxu0 0
    %93 = vmatprep.subr.bf16.mxu0 0
    %94 = vmatpush2.bf16.msra.mxu0 0
    %95 = vmatprep.subr.bf16.mxu0 0
    %96 = vmatpush2.bf16.msra.mxu0 0
    %97 = vmatprep.subr.bf16.mxu0 0
    %98 = vmatpush2.bf16.msra.mxu0 0
    %99 = vmatprep.mubr.bf16.mxu0 0
    %100 = vmatmul.mubr.bf16.gmra.mxu0 %v65
    %v101 = vpop.f32.mrf.mxu0
    %v102 = vadd.f32 0.0, %v101
    %v103 = vpop.f32.mrf.mxu0
    %v104 = vpop.f32.mrf.mxu0
    %v105 = vpop.f32.mrf.mxu0
    %106 = vdwg.mxu0
    %v107 = vld [vmem:[%s2] sm:$0x1]
    %v108 = vld [vmem:[%s3] sm:$0x1]
    %v109 = vrot.slane %v102, 4
    %v110 = vadd.f32 %v102, %v109
    %v111 = vrot.slane %v110, 2
    %v112 = vadd.f32 %v110, %v111
    %v113 = vrot.slane %v112, 1
    %v114 = vadd.f32 %v112, %v113
    %v115 = vmul.f32 %v114, 0.125
    %v116 = vsub.f32 %v102, %v115
    %v117 = vmul.f32 %v116, %v116
    %v118 = vrot.slane %v117, 4
    %v119 = vadd.f32 %v117, %v118
    %v120 = vrot.slane %v119, 2
    %v121 = vadd.f32 %v119, %v120
    %v122 = vrot.slane %v121, 1
    %v123 = vadd.f32 %v121, %v122
    %v124 = vmul.f32 %v123, 0.125
    %v125 = vmax.f32 %v124, 0.0
    %v126 = vadd.f32 %v125, 1e-05
    %v127 = vrsqrt.pop %v126
    %v128 = vmul.f32 %v107, %v127
    %v130 = vlaneseq
    %v131 = vshrl.u32 %v130, 7
    %v132 = vsub.s32 0, %v131
    %v133 = vrot.slane %v128, %v132
    %v135 = vmul.f32 %v116, %v133
    %v137 = vlaneseq
    %v138 = vshrl.u32 %v137, 7
    %v139 = vsub.s32 0, %v138
    %v140 = vrot.slane %v108, %v139
    %v142 = vadd.f32 %v135, %v140
    %143 = vst [vmem:[#allocation7] sm:$0xff] %v142
    // Predicated region
    $region26: #{tpu_custom_call.1} parent=1 // pred_check
      _
    $region27: #{tpu_custom_call.1} parent=1 // pred_check_branch
      %145 = sbr.rel (0) target = $region29
    $region28: #{tpu_custom_call.1} parent=1 // pred_region
      %s147 = ssub.s32 128, 128
      %148 = vsyncadd [#allocation4], %s147
      %s150 = sshll.u32 [#allocation7], 4
      %s151 = int_to_ptr.vmem [resolvable:$true] %s150
      %153 = dma.vmem_to_hbm [thread:$0]  %s151, 128, %s4, [#allocation4]
    $region29: #{tpu_custom_call.1} parent=1 // pred_fallthru
      _
    // Predicated region
    $region30: #{tpu_custom_call.1} parent=1 // pred_check
      _
    $region31: #{tpu_custom_call.1} parent=1 // pred_check_branch
      %155 = sbr.rel (0) target = $region33
    $region32: #{tpu_custom_call.1} parent=1 // pred_region
      %156 = dma.done [#allocation4], 128
    $region33: #{tpu_custom_call.1} parent=1 // pred_fallthru
      _
    %157 = vsyncpa [#allocation3], 1
    %158 = vsyncpa [#allocation6], 1
    %159 = vsyncpa [#allocation4], 1

</llo_original>
